<compile_context>
chip_gen: v7x
topology: tpu7x:2x2x1
jax: 0.10.0
libtpu: 0.0.40
codegen_flags: <defaults>
</compile_context>

<pallas_src>
import functools

import jax
import jax.numpy as jnp
from jax import lax
from jax.experimental import pallas as pl
from jax.experimental.pallas import tpu as pltpu


# ---------------------------------------------------------------------------
# Fused kernel: im2col-matmul conv + folded-BN shift + ReLU + 3x3/s2 maxpool
# ---------------------------------------------------------------------------
def _fused_stem_kernel(a_ref, halo_ref, w_ref, shift_ref, o_ref, *, tp, wop):
    # a_ref:     (2*tp*wop, 2K) bf16  patches of conv rows [2*tp*t, 2*tp*(t+1)),
    #                                 adjacent output columns paired on the K axis
    # halo_ref:  (wop, 2K)      bf16  patches of conv row max(2*tp*t - 1, 0)
    # w_ref:     (2K, 2C)       bf16  block-diag(W, W), BN scale folded in
    # shift_ref: (1, 2C)        f32   [shift | shift]
    # o_ref:     (1, tp, wop, C) f32  pooled output rows [tp*t, tp*(t+1))
    c2 = w_ref.shape[1]
    c = c2 // 2

    # conv + BN shift + ReLU, f32 accumulation on the MXU.  One matmul row
    # yields two adjacent conv output columns -> the 2C = 128 output lanes are
    # fully dense and the pooling below needs no lane/sublane relayout.
    y = jnp.dot(a_ref[...], w_ref[...], preferred_element_type=jnp.float32)
    y = jnp.maximum(y + shift_ref[...], 0.0)                  # (2*tp*wop, 2C)

    # Recompute the single backward-halo conv row (cheap: wop x 2K x 2C MACs);
    # keeps every grid step independent so both grid axes stay "parallel".
    hy = jnp.dot(halo_ref[...], w_ref[...], preferred_element_type=jnp.float32)
    hy = jnp.maximum(hy + shift_ref[...], 0.0)                # (wop, 2C)

    # --- maxpool 3x3 / stride 2 / pad 1 ---
    # Row stage: pooled row p uses conv rows {2p-1, 2p, 2p+1}.
    yr = y.reshape(tp, 2, wop, c2)
    ev = yr[:, 0]                                             # conv rows 2p
    od = yr[:, 1]                                             # conv rows 2p+1
    if tp > 1:
        od_prev = jnp.concatenate([hy[None], od[: tp - 1]], axis=0)  # rows 2p-1
    else:
        od_prev = hy[None]
    rowmax = jnp.maximum(jnp.maximum(ev, od), od_prev)        # (tp, wop, 2C)

    # Column stage: pooled col j uses conv cols {2j-1, 2j, 2j+1}.  Lanes already
    # hold the (2j, 2j+1) pair; col 2j-1 is the previous pair's odd column.
    # Duplicating the edge column at j == 0 is exact for max pooling.
    ce = rowmax[:, :, :c]                                     # cols 2j
    co = rowmax[:, :, c:]                                     # cols 2j+1
    co_prev = jnp.concatenate([ce[:, :1], co[:, : wop - 1]], axis=1)  # cols 2j-1
    out = jnp.maximum(jnp.maximum(ce, co), co_prev)           # (tp, wop, C)
    o_ref[...] = out[None].astype(o_ref.dtype)


def _pick_tp(pooled_h, band_row_bytes, target_bytes=2 * 1024 * 1024):
    """Largest divisor of pooled_h whose A band fits target_bytes; prefer >=2 bands."""
    divs = [d for d in range(1, pooled_h + 1) if pooled_h % d == 0]
    fit = [d for d in divs if d * band_row_bytes <= target_bytes] or [1]
    best = max(fit)
    if pooled_h // best < 2:
        multi = [d for d in fit if pooled_h // d >= 2]
        if multi:
            best = max(multi)
    return best


def fused_conv_bn_relu_maxpool(patches2, w2, shift2, *, n, ho, wo):
    """patches2: (N*Ho*(Wo//2), 2K) bf16 column-paired im2col patches.
       w2: (2K, 2C) bf16 duplex (block-diagonal) weights, BN scale folded in.
       shift2: (1, 2C) f32 duplicated BN shift.
       Returns pooled activations (N, Ho//2, Wo//2, C) f32."""
    m2, k2 = patches2.shape
    c2 = w2.shape[1]
    cout = c2 // 2
    pooled_h, pooled_w = ho // 2, wo // 2
    assert m2 == n * ho * pooled_w

    band_row_bytes = wo * k2 * patches2.dtype.itemsize  # A bytes per pooled row
    tp = _pick_tp(pooled_h, band_row_bytes)
    n_bands = pooled_h // tp

    def a_map(i, t):
        return (i * n_bands + t, 0)

    def halo_map(i, t):
        # conv row 2*tp*t - 1 of image i, clamped to row 0 for the top band
        # (duplicating conv row 0 in the pooling max is exact).
        return (i * ho + jnp.maximum(2 * tp * t - 1, 0), 0)

    kernel = functools.partial(_fused_stem_kernel, tp=tp, wop=pooled_w)
    return pl.pallas_call(
        kernel,
        out_shape=jax.ShapeDtypeStruct((n, pooled_h, pooled_w, cout), jnp.float32),
        grid_spec=pltpu.PrefetchScalarGridSpec(
            num_scalar_prefetch=0,
            grid=(n, n_bands),
            in_specs=[
                pl.BlockSpec((tp * wo, k2), a_map),        # main band of patches
                pl.BlockSpec((pooled_w, k2), halo_map),    # 1-conv-row backward halo
                pl.BlockSpec((k2, c2), lambda i, t: (0, 0)),
                pl.BlockSpec((1, c2), lambda i, t: (0, 0)),
            ],
            out_specs=pl.BlockSpec((1, tp, pooled_w, cout),
                                   lambda i, t: (i, t, 0, 0)),
        ),
        compiler_params=pltpu.CompilerParams(
            dimension_semantics=("parallel", "parallel"),
            vmem_limit_bytes=32 * 1024 * 1024),
    )(patches2, patches2, w2, shift2)


# ---------------------------------------------------------------------------
# Full forward (share_net=1): conv1 -> bn1 -> relu -> maxpool
# ---------------------------------------------------------------------------
def visible_module_forward(x_nchw, params):
    w = params["conv1_w"]                                  # (64, 3, 7, 7) OIHW
    gamma, beta = params["bn_gamma"], params["bn_beta"]
    mean, var = params["bn_mean"], params["bn_var"]
    eps = 1e-5

    N, Cin, H, W = x_nchw.shape
    Cout, _, KH, KW = w.shape
    stride, pad = 2, 3
    assert H % 4 == 0 and W % 32 == 0, "stem kernel assumes H % 4 == 0, W % 32 == 0"
    Ho = (H + 2 * pad - KH) // stride + 1
    Wo = (W + 2 * pad - KW) // stride + 1
    K = KH * KW * Cin

    # Fold eval-mode BatchNorm: scale into the weights, shift as a bias.
    scale = gamma / jnp.sqrt(var + eps)
    shift = (beta - mean * scale).astype(jnp.float32)
    w_mat = jnp.transpose(w, (2, 3, 1, 0)).reshape(K, Cout) * scale[None, :]
    # Duplex weights: block-diag(W, W) so one matmul row produces two adjacent
    # conv output columns (zero blocks kill the cross terms exactly).
    w2 = jnp.zeros((2 * K, 2 * Cout), jnp.float32)
    w2 = w2.at[:K, :Cout].set(w_mat).at[K:, Cout:].set(w_mat).astype(jnp.bfloat16)
    shift2 = jnp.concatenate([shift, shift]).reshape(1, 2 * Cout)

    # im2col in bf16, staged by XLA (patch order (kh, kw, cin) matches w_mat).
    x = jnp.transpose(x_nchw, (0, 2, 3, 1)).astype(jnp.bfloat16)      # NHWC
    xp = jnp.pad(x, ((0, 0), (pad, pad), (pad, pad), (0, 0)))
    cols = [xp[:, kh:kh + stride * Ho:stride, kw:kw + stride * Wo:stride, :]
            for kh in range(KH) for kw in range(KW)]
    patches = jnp.stack(cols, axis=3)                      # (N, Ho, Wo, KH*KW, Cin)
    # Pair adjacent output columns on the K axis: pure row-major reshape (free).
    patches2 = patches.reshape(N * Ho * (Wo // 2), 2 * K)

    y = fused_conv_bn_relu_maxpool(patches2, w2, shift2, n=N, ho=Ho, wo=Wo)
    return jnp.transpose(y, (0, 3, 1, 2))                  # back to NCHW, f32


# ---------------------------------------------------------------------------
def _reference_forward(x_nchw, p):
    """Plain-XLA reference with the same math (bf16 conv inputs, f32 accum)."""
    eps = 1e-5
    scale = p["bn_gamma"] / jnp.sqrt(p["bn_var"] + eps)
    shift = p["bn_beta"] - p["bn_mean"] * scale
    w_s = (p["conv1_w"] * scale[:, None, None, None]).astype(jnp.bfloat16)
    y = lax.conv_general_dilated(
        x_nchw.astype(jnp.bfloat16), w_s, window_strides=(2, 2),
        padding=((3, 3), (3, 3)),
        dimension_numbers=("NCHW", "OIHW", "NCHW"),
        preferred_element_type=jnp.float32)
    y = jnp.maximum(y + shift[None, :, None, None], 0.0)
    y = lax.reduce_window(
        y, -jnp.inf, lax.max,
        window_dimensions=(1, 1, 3, 3), window_strides=(1, 1, 2, 2),
        padding=[(0, 0), (0, 0), (1, 1), (1, 1)])
    return y


if __name__ == "__main__":
    key = jax.random.PRNGKey(0)
    k1, k2, k3, k4, k5, k6 = jax.random.split(key, 6)

    # Small but shape-consistent input: RGB batch (N=2, C=3, H=W=32).
    x = jax.random.normal(k1, (2, 3, 32, 32), jnp.float32)

    # Deterministic synthetic parameters (ResNet-50 stem shapes).
    params = {
        "conv1_w": jax.random.normal(k2, (64, 3, 7, 7), jnp.float32) * 0.05,
        "bn_gamma": jax.random.uniform(k3, (64,), jnp.float32, 0.5, 1.5),
        "bn_beta": jax.random.normal(k4, (64,), jnp.float32) * 0.1,
        "bn_mean": jax.random.normal(k5, (64,), jnp.float32) * 0.1,
        "bn_var": jax.random.uniform(k6, (64,), jnp.float32, 0.5, 1.5),
    }

    out = jax.block_until_ready(jax.jit(visible_module_forward)(x, params))
    ref = _reference_forward(x, params)
    assert out.shape == ref.shape == (2, 64, 8, 8), (out.shape, ref.shape)
    assert bool(jnp.allclose(out, ref, atol=2e-3, rtol=2e-3)), "mismatch vs reference"

    print("KERNEL_OK")
</pallas_src>

<mosaic_0001>
module attributes {stable_mosaic.version = 11 : i64} {
  func.func @_fused_stem_kernel(%arg0: i32, %arg1: i32, %arg2: memref<64x294xbf16, #tpu.memory_space<vmem>>, %arg3: memref<8x294xbf16, #tpu.memory_space<vmem>>, %arg4: memref<294x128xbf16, #tpu.memory_space<vmem>>, %arg5: memref<1x128xf32, #tpu.memory_space<vmem>>, %arg6: memref<1x4x8x64xf32, #tpu.memory_space<vmem>>) attributes {dimension_semantics = [#tpu.dimension_semantics<parallel>, #tpu.dimension_semantics<parallel>], iteration_bounds = array<i64: 2, 2>, scalar_prefetch = 0 : i64, scratch_operands = 0 : i64, tpu.core_type = #tpu.core_type<tc>, window_params = [{transform_indices = @transform_0, window_bounds = array<i64: 64, 294>}, {transform_indices = @transform_1, window_bounds = array<i64: 8, 294>}, {pipeline_mode = #tpu.pipeline_mode<synchronous>, transform_indices = @transform_2, window_bounds = array<i64: 294, 128>}, {pipeline_mode = #tpu.pipeline_mode<synchronous>, transform_indices = @transform_3, window_bounds = array<i64: 1, 128>}, {transform_indices = @transform_4, window_bounds = array<i64: 1, 4, 8, 64>}]} {
    %c0 = arith.constant 0 : index
    %c0_0 = arith.constant 0 : index
    %0 = vector.load %arg2[%c0, %c0_0] : memref<64x294xbf16, #tpu.memory_space<vmem>>, vector<64x294xbf16>
    %c0_1 = arith.constant 0 : index
    %c0_2 = arith.constant 0 : index
    %1 = vector.load %arg4[%c0_1, %c0_2] : memref<294x128xbf16, #tpu.memory_space<vmem>>, vector<294x128xbf16>
    %cst = arith.constant dense<0.000000e+00> : vector<64x128xf32>
    %2 = tpu.matmul %0, %1, %cst {dimension_numbers = #tpu.dot_dimension_numbers<[1], [0], [0], [1], [0, 0, 1, 1], [], []>} : vector<64x294xbf16>, vector<294x128xbf16>, vector<64x128xf32> -> vector<64x128xf32>
    %c0_3 = arith.constant 0 : index
    %c0_4 = arith.constant 0 : index
    %3 = vector.load %arg5[%c0_3, %c0_4] : memref<1x128xf32, #tpu.memory_space<vmem>>, vector<1x128xf32>
    %4 = vector.broadcast %3 : vector<1x128xf32> to vector<64x128xf32>
    %5 = arith.addf %2, %4 : vector<64x128xf32>
    %cst_5 = arith.constant 0.000000e+00 : f32
    %6 = vector.broadcast %cst_5 : f32 to vector<64x128xf32>
    %7 = arith.maximumf %5, %6 : vector<64x128xf32>
    %c0_6 = arith.constant 0 : index
    %c0_7 = arith.constant 0 : index
    %8 = vector.load %arg3[%c0_6, %c0_7] : memref<8x294xbf16, #tpu.memory_space<vmem>>, vector<8x294xbf16>
    %c0_8 = arith.constant 0 : index
    %c0_9 = arith.constant 0 : index
    %9 = vector.load %arg4[%c0_8, %c0_9] : memref<294x128xbf16, #tpu.memory_space<vmem>>, vector<294x128xbf16>
    %cst_10 = arith.constant dense<0.000000e+00> : vector<8x128xf32>
    %10 = tpu.matmul %8, %9, %cst_10 {dimension_numbers = #tpu.dot_dimension_numbers<[1], [0], [0], [1], [0, 0, 1, 1], [], []>} : vector<8x294xbf16>, vector<294x128xbf16>, vector<8x128xf32> -> vector<8x128xf32>
    %c0_11 = arith.constant 0 : index
    %c0_12 = arith.constant 0 : index
    %11 = vector.load %arg5[%c0_11, %c0_12] : memref<1x128xf32, #tpu.memory_space<vmem>>, vector<1x128xf32>
    %12 = vector.broadcast %11 : vector<1x128xf32> to vector<8x128xf32>
    %13 = arith.addf %10, %12 : vector<8x128xf32>
    %cst_13 = arith.constant 0.000000e+00 : f32
    %14 = vector.broadcast %cst_13 : f32 to vector<8x128xf32>
    %15 = arith.maximumf %13, %14 : vector<8x128xf32>
    %16 = vector.shape_cast %7 : vector<64x128xf32> to vector<4x2x8x128xf32>
    %17 = vector.extract_strided_slice %16 {offsets = [0, 0, 0, 0], sizes = [4, 1, 8, 128], strides = [1, 1, 1, 1]} : vector<4x2x8x128xf32> to vector<4x1x8x128xf32>
    %18 = vector.shape_cast %17 : vector<4x1x8x128xf32> to vector<4x8x128xf32>
    %19 = vector.extract_strided_slice %16 {offsets = [0, 1, 0, 0], sizes = [4, 1, 8, 128], strides = [1, 1, 1, 1]} : vector<4x2x8x128xf32> to vector<4x1x8x128xf32>
    %20 = vector.shape_cast %19 : vector<4x1x8x128xf32> to vector<4x8x128xf32>
    %21 = vector.shape_cast %15 : vector<8x128xf32> to vector<1x8x128xf32>
    %22 = vector.extract_strided_slice %20 {offsets = [0, 0, 0], sizes = [3, 8, 128], strides = [1, 1, 1]} : vector<4x8x128xf32> to vector<3x8x128xf32>
    %23 = tpu.concatenate %21, %22 in 0 : vector<1x8x128xf32>, vector<3x8x128xf32> -> vector<4x8x128xf32>
    %24 = arith.maximumf %18, %20 : vector<4x8x128xf32>
    %25 = arith.maximumf %24, %23 : vector<4x8x128xf32>
    %26 = vector.extract_strided_slice %25 {offsets = [0, 0, 0], sizes = [4, 8, 64], strides = [1, 1, 1]} : vector<4x8x128xf32> to vector<4x8x64xf32>
    %27 = vector.extract_strided_slice %25 {offsets = [0, 0, 64], sizes = [4, 8, 64], strides = [1, 1, 1]} : vector<4x8x128xf32> to vector<4x8x64xf32>
    %28 = vector.extract_strided_slice %26 {offsets = [0, 0, 0], sizes = [4, 1, 64], strides = [1, 1, 1]} : vector<4x8x64xf32> to vector<4x1x64xf32>
    %29 = vector.extract_strided_slice %27 {offsets = [0, 0, 0], sizes = [4, 7, 64], strides = [1, 1, 1]} : vector<4x8x64xf32> to vector<4x7x64xf32>
    %30 = tpu.concatenate %28, %29 in 1 : vector<4x1x64xf32>, vector<4x7x64xf32> -> vector<4x8x64xf32>
    %31 = arith.maximumf %26, %27 : vector<4x8x64xf32>
    %32 = arith.maximumf %31, %30 : vector<4x8x64xf32>
    %33 = vector.shape_cast %32 : vector<4x8x64xf32> to vector<1x4x8x64xf32>
    %c0_14 = arith.constant 0 : index
    %c0_15 = arith.constant 0 : index
    %c0_16 = arith.constant 0 : index
    %c0_17 = arith.constant 0 : index
    %34 = vector.load %arg6[%c0_14, %c0_15, %c0_16, %c0_17] : memref<1x4x8x64xf32, #tpu.memory_space<vmem>>, vector<1x4x8x64xf32>
    tpu.vector_store %arg6[%c0_14, %c0_15, %c0_16, %c0_17], %33 {strides = array<i32>} : memref<1x4x8x64xf32, #tpu.memory_space<vmem>>, vector<1x4x8x64xf32>,
    return
  }
  func.func @transform_0(%arg0: i32, %arg1: i32) -> (i32, i32) {
    %c2_i32 = arith.constant 2 : i32
    %0 = arith.muli %arg0, %c2_i32 : i32
    %1 = arith.addi %0, %arg1 : i32
    %c0_i32 = arith.constant 0 : i32
    %c0_i32_0 = arith.constant 0 : i32
    return %1, %c0_i32 : i32, i32
  }
  func.func @transform_1(%arg0: i32, %arg1: i32) -> (i32, i32) {
    %c16_i32 = arith.constant 16 : i32
    %0 = arith.muli %arg0, %c16_i32 : i32
    %c8_i32 = arith.constant 8 : i32
    %1 = arith.muli %c8_i32, %arg1 : i32
    %c1_i32 = arith.constant 1 : i32
    %2 = arith.subi %1, %c1_i32 : i32
    %c0_i32 = arith.constant 0 : i32
    %3 = arith.maxsi %2, %c0_i32 : i32
    %4 = arith.addi %0, %3 : i32
    %c0_i32_0 = arith.constant 0 : i32
    %c0_i32_1 = arith.constant 0 : i32
    return %4, %c0_i32_0 : i32, i32
  }
  func.func @transform_2(%arg0: i32, %arg1: i32) -> (i32, i32) {
    %c0_i32 = arith.constant 0 : i32
    %c0_i32_0 = arith.constant 0 : i32
    %c0_i32_1 = arith.constant 0 : i32
    return %c0_i32, %c0_i32_0 : i32, i32
  }
  func.func @transform_3(%arg0: i32, %arg1: i32) -> (i32, i32) {
    %c0_i32 = arith.constant 0 : i32
    %c0_i32_0 = arith.constant 0 : i32
    %c0_i32_1 = arith.constant 0 : i32
    return %c0_i32, %c0_i32_0 : i32, i32
  }
  func.func @transform_4(%arg0: i32, %arg1: i32) -> (i32, i32, i32, i32) {
    %c0_i32 = arith.constant 0 : i32
    %c0_i32_0 = arith.constant 0 : i32
    %c0_i32_1 = arith.constant 0 : i32
    return %arg0, %arg1, %c0_i32, %c0_i32_0 : i32, i32, i32, i32
  }
}

</mosaic_0001>

<llo_original>
// kernel: visible_module_forward.1
$region0: #{visible_module_forward.1}
  #allocation0 [shape = 'u32[]', space=smem, size = 0x4, offset = 0x4, fixed_abs, tag = 'smem constant byte address 0x4 - core index']
  #allocation1 [shape = 'u32[144,128]{1,0:T(1,128)}', space=vmem, size = 0x12000, scoped, tag = 'internal scratch']
  %s0 = inlined_call_operand.vmem [shape: bf16[256,294], index: 0, kind: input, shape index: {}, may-alias: {0,1}]
  %s1 = inlined_call_operand.vmem [shape: bf16[256,294], index: 1, kind: input, shape index: {}, may-alias: {0,1}]
  %s2 = inlined_call_operand.vmem [shape: bf16[294,128], index: 2, kind: input, shape index: {}]
  %s3 = inlined_call_operand.vmem [shape: f32[1,128], index: 3, kind: input, shape index: {}]
  %s4 = inlined_call_operand.hbm [shape: f32[2,8,8,64], index: 4, kind: output, shape index: {}]
  %s5 = sld [smem:[#allocation0]]
  $region49: #{visible_module_forward.1} parent=0
    _
  %s7 = ssub.s32 1, %s5
  %s8 = scalar_select 0, %s7, %s5
  $region1: #{visible_module_forward.1} parent=0
    #allocation2 [shape = 'u8[32768]{0}', space=vmem, size = 0x8000, scoped, tag = 'output window, operand 0']
    #allocation3 [shape = 's32[2]{0}', space=sflag, size = 0x8, scoped, tag = 'scoped memory for visible_module_forward.1']
    %9 = vsyncpa [#allocation3], 0
    %s10 = scalar_lea.sflag [#allocation3], 1
    %11 = vsyncpa %s10, 0
    loop: start=0, step=1, limit=6
    $region2: #{visible_module_forward.1} parent=1 // loop_pre_header
      _
    $region3: #{visible_module_forward.1} parent=1 // loop_header
      %s13 = sphi 0, %s17
      %p14 = scmp.ge.s32.totalorder %s13, 6
      %s20 = sphi 0, %s32
      %s21 = sphi 0, %s28
      %s22 = sphi 0, %s20
      %s23 = sphi 0, %s21
      %s24 = sphi 0, %s22
      %s25 = sphi 0, %s23
      %s39 = sphi 0, %s41
      %s42 = sphi 0, %s39
      %s43 = sphi 0, %s42
      %s59 = sphi 0, %s43
      %s77 = sphi 0, %s79
      %s80 = sphi 0, %s77
      %s81 = sphi 0, %s80
      %s97 = sphi 0, %s81
      %s101 = sphi 0, %s101
      %s103 = sphi 0, %s101
      %s104 = sphi 0, %s103
      %s118 = sphi 0, %s104
      %s122 = sphi 0, %s122
      %s124 = sphi 0, %s122
      %s125 = sphi 0, %s124
      %s139 = sphi 0, %s125
      %s147 = sphi 0, %s149
      %s150 = sphi 0, %s147
      %s151 = sphi 0, %s150
      %s167 = sphi 0, %s151
    $region4: #{visible_module_forward.1} parent=1 // loop_header_branch
      %16 = sbr.rel (%p14) target = $region8
    $region5: #{visible_module_forward.1} parent=1 // loop_body
      %s18 = ssub.s32 %s13, 1
      %s19 = ssub.s32 %s13, 2
      %s26 = sadd.s32 1, %s21
      %p27 = scmp.ge.s32.totalorder %s26, 2
      %s28 = scalar_select %p27, 0, %s26
      %s29 = sadd.s32 1, %s20
      %s30 = scalar_select %p27, %s29, %s20
      %p31 = scmp.ge.s32.totalorder %s30, 2
      %s32 = scalar_select %p31, 0, %s30
      %s33 = smul.u32 %s20, 2
      %s34 = sadd.s32 %s33, %s21
      %s35 = smul.u32 %s32, 2
      %s36 = sadd.s32 %s35, %s28
      %s37 = ssub.s32 %s34, %s36
      %p38 = scmp.eq.s32.totalorder %s37, 0
      %s40 = sadd.s32 %s39, 1
      %s41 = scalar_select %p38, %s39, %s40
      %p44 = pneg %p38
      %p45 = scmp.eq.s32.totalorder %s13, 3
      %p46 = por %p44, %p45
      %p47 = scmp.ne.s32.totalorder %s39, %s42
      %p48 = scmp.eq.s32.totalorder %s13, 0
      %p49 = por %p47, %p48
      %p50 = scmp.ne.s32.totalorder %s39, %s42
      %p51 = scmp.eq.s32.totalorder %s18, 3
      %p52 = por %p50, %p51
      %p53 = scmp.ne.s32.totalorder %s42, %s43
      %p54 = scmp.eq.s32.totalorder %s18, 0
      %p55 = por %p53, %p54
      %p56 = scmp.ne.s32.totalorder %s42, %s43
      %p57 = scmp.eq.s32.totalorder %s19, 3
      %p58 = por %p56, %p57
      %p60 = scmp.ne.s32.totalorder %s43, %s59
      %p61 = scmp.eq.s32.totalorder %s19, 0
      %p62 = por %p60, %p61
      %s63 = smul.u32 %s20, 16
      %s64 = smul.u32 %s21, 8
      %s65 = ssub.s32 %s64, 1
      %p66 = scmp.gt.s32.totalorder %s65, 0
      %s67 = scalar_select %p66, %s65, 0
      %s68 = sadd.s32 %s63, %s67
      %s69 = smul.u32 %s32, 16
      %s70 = smul.u32 %s28, 8
      %s71 = ssub.s32 %s70, 1
      %p72 = scmp.gt.s32.totalorder %s71, 0
      %s73 = scalar_select %p72, %s71, 0
      %s74 = sadd.s32 %s69, %s73
      %s75 = ssub.s32 %s68, %s74
      %p76 = scmp.eq.s32.totalorder %s75, 0
      %s78 = sadd.s32 %s77, 1
      %s79 = scalar_select %p76, %s77, %s78
      %p82 = pneg %p76
      %p83 = scmp.eq.s32.totalorder %s13, 3
      %p84 = por %p82, %p83
      %p85 = scmp.ne.s32.totalorder %s77, %s80
      %p86 = scmp.eq.s32.totalorder %s13, 0
      %p87 = por %p85, %p86
      %p88 = scmp.ne.s32.totalorder %s77, %s80
      %p89 = scmp.eq.s32.totalorder %s18, 3
      %p90 = por %p88, %p89
      %p91 = scmp.ne.s32.totalorder %s80, %s81
      %p92 = scmp.eq.s32.totalorder %s18, 0
      %p93 = por %p91, %p92
      %p94 = scmp.ne.s32.totalorder %s80, %s81
      %p95 = scmp.eq.s32.totalorder %s19, 3
      %p96 = por %p94, %p95
      %p98 = scmp.ne.s32.totalorder %s81, %s97
      %p99 = scmp.eq.s32.totalorder %s19, 0
      %p100 = por %p98, %p99
      %s102 = sadd.s32 %s101, 1
      %p105 = scmp.eq.s32.totalorder %s13, 3
      %p106 = scmp.ne.s32.totalorder %s101, %s103
      %p107 = scmp.eq.s32.totalorder %s13, 0
      %p108 = por %p106, %p107
      %p109 = scmp.ne.s32.totalorder %s101, %s103
      %p110 = scmp.eq.s32.totalorder %s18, 3
      %p111 = por %p109, %p110
      %p112 = scmp.ne.s32.totalorder %s103, %s104
      %p113 = scmp.eq.s32.totalorder %s18, 0
      %p114 = por %p112, %p113
      %p115 = scmp.ne.s32.totalorder %s103, %s104
      %p116 = scmp.eq.s32.totalorder %s19, 3
      %p117 = por %p115, %p116
      %p119 = scmp.ne.s32.totalorder %s104, %s118
      %p120 = scmp.eq.s32.totalorder %s19, 0
      %p121 = por %p119, %p120
      %s123 = sadd.s32 %s122, 1
      %p126 = scmp.eq.s32.totalorder %s13, 3
      %p127 = scmp.ne.s32.totalorder %s122, %s124
      %p128 = scmp.eq.s32.totalorder %s13, 0
      %p129 = por %p127, %p128
      %p130 = scmp.ne.s32.totalorder %s122, %s124
      %p131 = scmp.eq.s32.totalorder %s18, 3
      %p132 = por %p130, %p131
      %p133 = scmp.ne.s32.totalorder %s124, %s125
      %p134 = scmp.eq.s32.totalorder %s18, 0
      %p135 = por %p133, %p134
      %p136 = scmp.ne.s32.totalorder %s124, %s125
      %p137 = scmp.eq.s32.totalorder %s19, 3
      %p138 = por %p136, %p137
      %p140 = scmp.ne.s32.totalorder %s125, %s139
      %p141 = scmp.eq.s32.totalorder %s19, 0
      %p142 = por %p140, %p141
      %s143 = ssub.s32 %s20, %s32
      %s144 = ssub.s32 %s21, %s28
      %s145 = sor.u32 %s143, %s144
      %p146 = scmp.eq.s32.totalorder %s145, 0
      %s148 = sadd.s32 %s147, 1
      %s149 = scalar_select %p146, %s147, %s148
      %p152 = pneg %p146
      %p153 = scmp.eq.s32.totalorder %s13, 3
      %p154 = por %p152, %p153
      %p155 = scmp.ne.s32.totalorder %s147, %s150
      %p156 = scmp.eq.s32.totalorder %s13, 0
      %p157 = por %p155, %p156
      %p158 = scmp.ne.s32.totalorder %s147, %s150
      %p159 = scmp.eq.s32.totalorder %s18, 3
      %p160 = por %p158, %p159
      %p161 = scmp.ne.s32.totalorder %s150, %s151
      %p162 = scmp.eq.s32.totalorder %s18, 0
      %p163 = por %p161, %p162
      %p164 = scmp.ne.s32.totalorder %s150, %s151
      %p165 = scmp.eq.s32.totalorder %s19, 3
      %p166 = por %p164, %p165
      %p168 = scmp.ne.s32.totalorder %s151, %s167
      %p169 = scmp.eq.s32.totalorder %s19, 0
      %p170 = por %p168, %p169
      %p171 = scmp.le.s32.totalorder 1, %s13
      %p172 = scmp.lt.s32.totalorder %s13, 5
      %p173 = pnand %p171, %p172
      %p174 = pneg %p173
      // Predicated region
      $region9: #{visible_module_forward.1} parent=5 // pred_check
        _
      $region10: #{visible_module_forward.1} parent=5 // pred_check_branch
        %176 = sbr.rel (%p173) target = $region12
      $region11: #{visible_module_forward.1} parent=5 // pred_region
        %s177 = ssub.s32 %s13, 1
        // Predicated region
        $region13: #{visible_module_forward.1} parent=11 // pred_check
          %p178 = pneg %p114
        $region14: #{visible_module_forward.1} parent=11 // pred_check_branch
          %180 = sbr.rel (%p178) target = $region16
        $region15: #{visible_module_forward.1} parent=11 // pred_region
          _
        $region16: #{visible_module_forward.1} parent=11 // pred_fallthru
          _
        // Predicated region
        $region17: #{visible_module_forward.1} parent=11 // pred_check
          %p181 = pneg %p135
        $region18: #{visible_module_forward.1} parent=11 // pred_check_branch
          %183 = sbr.rel (%p181) target = $region20
        $region19: #{visible_module_forward.1} parent=11 // pred_region
          _
        $region20: #{visible_module_forward.1} parent=11 // pred_fallthru
          _
      $region12: #{visible_module_forward.1} parent=5 // pred_fallthru
        _
      %p184 = scmp.lt.s32.totalorder %s13, 4
      // Predicated region
      $region21: #{visible_module_forward.1} parent=5 // pred_check
        %p185 = pneg %p184
      $region22: #{visible_module_forward.1} parent=5 // pred_check_branch
        %187 = sbr.rel (%p185) target = $region24
      $region23: #{visible_module_forward.1} parent=5 // pred_region
        // Predicated region
        $region25: #{visible_module_forward.1} parent=23 // pred_check
          %p188 = pneg %p49
        $region26: #{visible_module_forward.1} parent=23 // pred_check_branch
          %190 = sbr.rel (%p188) target = $region28
        $region27: #{visible_module_forward.1} parent=23 // pred_region
          %s191 = smul.u32 %s20, 2
          %s192 = sadd.s32 %s191, %s21
          %s193 = smul.u32 8, %s192
          %p194 = scmp.lt.s32.totalorder %s193, 31
          %s195 = scalar_select %p194, %s193, 31
          %s196 = smul.addr %s195, 3
          %s197 = smul.addr %s196, 4
          %s198 = scalar_lea.vmem %s0, %s197
          %s199 = smul.u32 %s20, 2
          %s200 = sadd.s32 %s199, %s21
          %s201 = smul.u32 8, %s200
        $region28: #{visible_module_forward.1} parent=23 // pred_fallthru
          _
        // Predicated region
        $region29: #{visible_module_forward.1} parent=23 // pred_check
          %p202 = pneg %p87
        $region30: #{visible_module_forward.1} parent=23 // pred_check_branch
          %204 = sbr.rel (%p202) target = $region32
        $region31: #{visible_module_forward.1} parent=23 // pred_region
          %s205 = smul.u32 %s20, 16
          %s206 = smul.u32 %s21, 8
          %s207 = ssub.s32 %s206, 1
          %p208 = scmp.gt.s32.totalorder %s207, 0
          %s209 = scalar_select %p208, %s207, 0
          %s210 = sadd.s32 %s205, %s209
          %p211 = scmp.lt.s32.totalorder %s210, 31
          %s212 = scalar_select %p211, %s210, 31
          %s213 = smul.addr %s212, 3
          %s214 = smul.addr %s213, 4
          %s215 = scalar_lea.vmem %s1, %s214
          %s216 = smul.u32 %s20, 16
          %s217 = smul.u32 %s21, 8
          %s218 = ssub.s32 %s217, 1
          %p219 = scmp.gt.s32.totalorder %s218, 0
          %s220 = scalar_select %p219, %s218, 0
          %s221 = sadd.s32 %s216, %s220
        $region32: #{visible_module_forward.1} parent=23 // pred_fallthru
          _
      $region24: #{visible_module_forward.1} parent=5 // pred_fallthru
        _
      %p222 = scmp.le.s32.totalorder 1, %s13
      %p223 = scmp.lt.s32.totalorder %s13, 5
      %p224 = pnand %p222, %p223
      %p225 = pneg %p224
      // Predicated region
      $region33: #{visible_module_forward.1} parent=5 // pred_check
        _
      $region34: #{visible_module_forward.1} parent=5 // pred_check_branch
        %227 = sbr.rel (%p224) target = $region36
      $region35: #{visible_module_forward.1} parent=5 // pred_region
        %s228 = ssub.s32 %s13, 1
        %s229 = smul.u32 %s22, 2
        %s230 = sadd.s32 %s229, %s23
        %s231 = smul.u32 8, %s230
        %p232 = scmp.lt.s32.totalorder %s231, 31
        %s233 = scalar_select %p232, %s231, 31
        %s234 = smul.addr %s233, 3
        %s235 = smul.addr %s234, 4
        %s236 = scalar_lea.vmem %s0, %s235
        %p237 = pneg %p55
        %p238 = pneg %p52
        %s239 = smul.u32 %s22, 16
        %s240 = smul.u32 %s23, 8
        %s241 = ssub.s32 %s240, 1
        %p242 = scmp.gt.s32.totalorder %s241, 0
        %s243 = scalar_select %p242, %s241, 0
        %s244 = sadd.s32 %s239, %s243
        %p245 = scmp.lt.s32.totalorder %s244, 31
        %s246 = scalar_select %p245, %s244, 31
        %s247 = smul.addr %s246, 3
        %s248 = smul.addr %s247, 4
        %s249 = scalar_lea.vmem %s1, %s248
        %p250 = pneg %p93
        %p251 = pneg %p90
        %p252 = pneg %p114
        %p253 = pneg %p111
        %p254 = pneg %p135
        %p255 = pneg %p132
        %p256 = pneg %p163
        %p257 = pneg %p160
        %s258 = sand.u32 %s150, 1
        %s259 = scalar_lea.sflag [#allocation3], %s258
        %s260 = sand.u32 %s150, 1
        %s261 = smul.addr %s260, 32
        %s262 = scalar_lea.vmem [#allocation2], %s261
        %s263 = smul.u32 %s22, 2
        %s264 = sadd.s32 %s263, %s23
        %s265 = smul.u32 8, %s264
        %p266 = scmp.lt.s32.totalorder %s265, 31
        %s267 = scalar_select %p266, %s265, 31
        %s268 = smul.addr %s267, 3
        %s269 = smul.addr %s268, 4
        %s270 = scalar_lea.vmem %s0, %s269
        %s271 = smul.u32 %s22, 2
        %s272 = sadd.s32 %s271, %s23
        %s273 = smul.u32 8, %s272
        %s274 = smul.u32 %s22, 16
        %s275 = smul.u32 %s23, 8
        %s276 = ssub.s32 %s275, 1
        %p277 = scmp.gt.s32.totalorder %s276, 0
        %s278 = scalar_select %p277, %s276, 0
        %s279 = sadd.s32 %s274, %s278
        %p280 = scmp.lt.s32.totalorder %s279, 31
        %s281 = scalar_select %p280, %s279, 31
        %s282 = smul.addr %s281, 3
        %s283 = smul.addr %s282, 4
        %s284 = scalar_lea.vmem %s1, %s283
        %s285 = smul.u32 %s22, 16
        %s286 = smul.u32 %s23, 8
        %s287 = ssub.s32 %s286, 1
        %p288 = scmp.gt.s32.totalorder %s287, 0
        %s289 = scalar_select %p288, %s287, 0
        %s290 = sadd.s32 %s285, %s289
        %s291 = smul.u32 4, %s23
        %v293 = vld [vmem:[%s270] sm:$0xff]
        %v294 = vld [vmem:[%s270 + $0x8] sm:$0xf]
        %v295 = vld [vmem:[%s270 + $0xc] sm:$0xff]
        %v296 = vld [vmem:[%s270 + $0x14] sm:$0xf]
        %v297 = vld [vmem:[%s270 + $0x18] sm:$0xff]
        %v298 = vld [vmem:[%s270 + $0x20] sm:$0xf]
        %v299 = vld [vmem:[%s270 + $0x24] sm:$0xff]
        %v300 = vld [vmem:[%s270 + $0x2c] sm:$0xf]
        %v301 = vld [vmem:[%s270 + $0x30] sm:$0xff]
        %v302 = vld [vmem:[%s270 + $0x38] sm:$0xf]
        %v303 = vld [vmem:[%s270 + $0x3c] sm:$0xff]
        %v304 = vld [vmem:[%s270 + $0x44] sm:$0xf]
        %v305 = vld [vmem:[%s270 + $0x48] sm:$0xff]
        %v306 = vld [vmem:[%s270 + $0x50] sm:$0xf]
        %v307 = vld [vmem:[%s270 + $0x54] sm:$0xff]
        %v308 = vld [vmem:[%s270 + $0x5c] sm:$0xf]
        %v309 = vld [vmem:[%s2] sm:$0xf]
        %v310 = vld [vmem:[%s2 + $0x4] sm:$0xf]
        %v311 = vld [vmem:[%s2 + $0x8] sm:$0xf]
        %v312 = vld [vmem:[%s2 + $0xc] sm:$0xf]
        %v313 = vld [vmem:[%s2 + $0x10] sm:$0xf]
        %v314 = vld [vmem:[%s2 + $0x14] sm:$0xf]
        %v315 = vld [vmem:[%s2 + $0x18] sm:$0xf]
        %v316 = vld [vmem:[%s2 + $0x1c] sm:$0xf]
        %v317 = vld [vmem:[%s2 + $0x20] sm:$0xf]
        %v318 = vld [vmem:[%s2 + $0x24] sm:$0xf]
        %v319 = vld [vmem:[%s2 + $0x28] sm:$0xf]
        %v320 = vld [vmem:[%s2 + $0x2c] sm:$0xf]
        %v321 = vld [vmem:[%s2 + $0x30] sm:$0xf]
        %v322 = vld [vmem:[%s2 + $0x34] sm:$0xf]
        %v323 = vld [vmem:[%s2 + $0x38] sm:$0xf]
        %v324 = vld [vmem:[%s2 + $0x3c] sm:$0xf]
        %v325 = vld [vmem:[%s2 + $0x40] sm:$0xf]
        %v326 = vld [vmem:[%s2 + $0x44] sm:$0xf]
        %v327 = vld [vmem:[%s2 + $0x48] sm:$0xf]
        %v328 = vld [vmem:[%s2 + $0x4c] sm:$0xf]
        %v329 = vld [vmem:[%s2 + $0x50] sm:$0xf]
        %v330 = vld [vmem:[%s2 + $0x54] sm:$0xf]
        %v331 = vld [vmem:[%s2 + $0x58] sm:$0xf]
        %v332 = vld [vmem:[%s2 + $0x5c] sm:$0xf]
        %v333 = vld [vmem:[%s2 + $0x60] sm:$0xf]
        %v334 = vld [vmem:[%s2 + $0x64] sm:$0xf]
        %v335 = vld [vmem:[%s2 + $0x68] sm:$0xf]
        %v336 = vld [vmem:[%s2 + $0x6c] sm:$0xf]
        %v337 = vld [vmem:[%s2 + $0x70] sm:$0xf]
        %v338 = vld [vmem:[%s2 + $0x74] sm:$0xf]
        %v339 = vld [vmem:[%s2 + $0x78] sm:$0xf]
        %v340 = vld [vmem:[%s2 + $0x7c] sm:$0xf]
        %v341 = vld [vmem:[%s2 + $0x80] sm:$0xf]
        %v342 = vld [vmem:[%s2 + $0x84] sm:$0xf]
        %v343 = vld [vmem:[%s2 + $0x88] sm:$0xf]
        %v344 = vld [vmem:[%s2 + $0x8c] sm:$0xf]
        %v345 = vld [vmem:[%s2 + $0x90] sm:$0x7]
        %v346 = vld [vmem:[%s3] sm:$0x1]
        %v348 = vlaneseq
        %v349 = vshrl.u32 %v348, 7
        %v350 = vsub.s32 0, %v349
        %v351 = vrot.slane %v346, %v350
        %v369 = vunpack.c.l.b16 %v293
        %v370 = vunpack.c.h.b16 %v293
        %v371 = vunpack.c.l.b16 %v294
        %v372 = vunpack.c.l.b16 %v295
        %v373 = vunpack.c.h.b16 %v295
        %v374 = vunpack.c.l.b16 %v296
        %v375 = vunpack.c.l.b16 %v297
        %v376 = vunpack.c.h.b16 %v297
        %v377 = vunpack.c.l.b16 %v298
        %v378 = vunpack.c.l.b16 %v299
        %v379 = vunpack.c.h.b16 %v299
        %v380 = vunpack.c.l.b16 %v300
        %v381 = vunpack.c.l.b16 %v301
        %v382 = vunpack.c.h.b16 %v301
        %v383 = vunpack.c.l.b16 %v302
        %v384 = vunpack.c.l.b16 %v303
        %v385 = vunpack.c.h.b16 %v303
        %v386 = vunpack.c.l.b16 %v304
        %v387 = vunpack.c.l.b16 %v305
        %v388 = vunpack.c.h.b16 %v305
        %v389 = vunpack.c.l.b16 %v306
        %v390 = vunpack.c.l.b16 %v307
        %v391 = vunpack.c.h.b16 %v307
        %v392 = vunpack.c.l.b16 %v308
        %v393 = vpack.c.b16 %v372, %v369
        %v394 = vpack.c.b16 %v373, %v370
        %v395 = vpack.c.b16 %v374, %v371
        %v396 = vpack.c.b16 %v378, %v375
        %v397 = vpack.c.b16 %v379, %v376
        %v398 = vpack.c.b16 %v380, %v377
        %v399 = vpack.c.b16 %v384, %v381
        %v400 = vpack.c.b16 %v385, %v382
        %v401 = vpack.c.b16 %v386, %v383
        %v402 = vpack.c.b16 %v390, %v387
        %v403 = vpack.c.b16 %v391, %v388
        %v404 = vpack.c.b16 %v392, %v389
        %v450 = vunpack.c.l.b16 %v309
        %v451 = vunpack.c.l.b16 %v310
        %v452 = vunpack.c.l.b16 %v311
        %v453 = vunpack.c.l.b16 %v312
        %v454 = vunpack.c.l.b16 %v313
        %v455 = vunpack.c.l.b16 %v314
        %v456 = vunpack.c.l.b16 %v315
        %v457 = vunpack.c.l.b16 %v316
        %v458 = vunpack.c.l.b16 %v317
        %v459 = vunpack.c.l.b16 %v318
        %v460 = vunpack.c.l.b16 %v319
        %v461 = vunpack.c.l.b16 %v320
        %v462 = vunpack.c.l.b16 %v321
        %v463 = vunpack.c.l.b16 %v322
        %v464 = vunpack.c.l.b16 %v323
        %v465 = vunpack.c.l.b16 %v324
        %v466 = vunpack.c.l.b16 %v325
        %v467 = vunpack.c.l.b16 %v326
        %v468 = vunpack.c.l.b16 %v327
        %v469 = vunpack.c.l.b16 %v328
        %v470 = vunpack.c.l.b16 %v329
        %v471 = vunpack.c.l.b16 %v330
        %v472 = vunpack.c.l.b16 %v331
        %v473 = vunpack.c.l.b16 %v332
        %v474 = vunpack.c.l.b16 %v333
        %v475 = vunpack.c.l.b16 %v334
        %v476 = vunpack.c.l.b16 %v335
        %v477 = vunpack.c.l.b16 %v336
        %v478 = vunpack.c.l.b16 %v337
        %v479 = vunpack.c.l.b16 %v338
        %v480 = vunpack.c.l.b16 %v339
        %v481 = vunpack.c.l.b16 %v340
        %v482 = vunpack.c.l.b16 %v341
        %v483 = vunpack.c.l.b16 %v342
        %v484 = vunpack.c.l.b16 %v343
        %v485 = vunpack.c.l.b16 %v344
        %v486 = vunpack.c.l.b16 %v345
        %v487 = vpack.c.b16 %v451, %v450
        %v488 = vpack.c.b16 %v453, %v452
        %v489 = vpack.c.b16 %v455, %v454
        %v490 = vpack.c.b16 %v457, %v456
        %v491 = vpack.c.b16 %v459, %v458
        %v492 = vpack.c.b16 %v461, %v460
        %v493 = vpack.c.b16 %v463, %v462
        %v494 = vpack.c.b16 %v465, %v464
        %v495 = vpack.c.b16 %v467, %v466
        %v496 = vpack.c.b16 %v469, %v468
        %v497 = vpack.c.b16 %v471, %v470
        %v498 = vpack.c.b16 %v473, %v472
        %v499 = vpack.c.b16 %v475, %v474
        %v500 = vpack.c.b16 %v477, %v476
        %v501 = vpack.c.b16 %v479, %v478
        %v502 = vpack.c.b16 %v481, %v480
        %v503 = vpack.c.b16 %v483, %v482
        %v504 = vpack.c.b16 %v485, %v484
        %v505 = vpack.c.b16 %v486, %v486
        %vm524 = vcmask 310272
        %v526 = vsel %vm524, %v395, 0
        %v529 = vsel %vm524, %v398, 0
        %v532 = vsel %vm524, %v401, 0
        %v535 = vsel %vm524, %v404, 0
        %vm537 = vcmask 1042432
        %v539 = vsel %vm537, %v505, 0
        %541 = vmatprep.subr.bf16.mxu0 0
        %542 = vmatpush1.bf16.msra.mxu0 %v487
        %543 = vmatprep.subr.bf16.mxu0 0
        %544 = vmatpush1.bf16.msra.mxu0 %v488
        %545 = vmatprep.subr.bf16.mxu0 0
        %546 = vmatpush1.bf16.msra.mxu0 %v489
        %547 = vmatprep.subr.bf16.mxu0 0
        %548 = vmatpush1.bf16.msra.mxu0 %v490
        %549 = vmatprep.subr.bf16.mxu0 0
        %550 = vmatpush1.bf16.msra.mxu0 %v491
        %551 = vmatprep.subr.bf16.mxu0 0
        %552 = vmatpush1.bf16.msra.mxu0 %v492
        %553 = vmatprep.subr.bf16.mxu0 0
        %554 = vmatpush1.bf16.msra.mxu0 %v493
        %555 = vmatprep.subr.bf16.mxu0 0
        %556 = vmatpush1.bf16.msra.mxu0 %v494
        %557 = vmatprep.subr.bf16.mxu0 0
        %558 = vmatpush1.bf16.msra.mxu0 %v495
        %559 = vmatprep.subr.bf16.mxu0 0
        %560 = vmatpush1.bf16.msra.mxu0 %v496
        %561 = vmatprep.subr.bf16.mxu0 0
        %562 = vmatpush1.bf16.msra.mxu0 %v497
        %563 = vmatprep.subr.bf16.mxu0 0
        %564 = vmatpush1.bf16.msra.mxu0 %v498
        %565 = vmatprep.subr.bf16.mxu0 0
        %566 = vmatpush1.bf16.msra.mxu0 %v499
        %567 = vmatprep.subr.bf16.mxu0 0
        %568 = vmatpush1.bf16.msra.mxu0 %v500
        %569 = vmatprep.subr.bf16.mxu0 0
        %570 = vmatpush1.bf16.msra.mxu0 %v501
        %571 = vmatprep.subr.bf16.mxu0 0
        %572 = vmatpush1.bf16.msra.mxu0 %v502
        %573 = vmatprep.mubr.bf16.mxu0 %v394
        %574 = vmatmul.mubr.bf16.gmra.mrb[0].mxu0 %v393
        %v575 = vpop.f32.mrb[0].mxu0
        %v576 = vadd.f32 %v351, %v575
        %v577 = vpop.f32.mrb[0].mxu0
        %v578 = vpop.f32.mrb[0].mxu0
        %v579 = vadd.f32 %v351, %v578
        %v580 = vpop.f32.mrb[0].mxu0
        %581 = vmatprep.mubr.bf16.mxu0 %v397
        %582 = vmatmul.mubr.bf16.gmra.mrb[0].mxu0 %v396
        %v583 = vpop.f32.mrb[0].mxu0
        %v584 = vadd.f32 %v351, %v583
        %v585 = vpop.f32.mrb[0].mxu0
        %v586 = vpop.f32.mrb[0].mxu0
        %v587 = vadd.f32 %v351, %v586
        %v588 = vpop.f32.mrb[0].mxu0
        %589 = vmatprep.mubr.bf16.mxu0 %v400
        %590 = vmatmul.mubr.bf16.gmra.mrb[0].mxu0 %v399
        %v591 = vpop.f32.mrb[0].mxu0
        %v592 = vadd.f32 %v351, %v591
        %v593 = vpop.f32.mrb[0].mxu0
        %v594 = vpop.f32.mrb[0].mxu0
        %v595 = vadd.f32 %v351, %v594
        %v596 = vpop.f32.mrb[0].mxu0
        %597 = vmatprep.mubr.bf16.mxu0 %v403
        %598 = vmatmul.mubr.bf16.gmra.mrb[0].mxu0 %v402
        %v599 = vpop.f32.mrb[0].mxu0
        %v600 = vadd.f32 %v351, %v599
        %v601 = vpop.f32.mrb[0].mxu0
        %v602 = vpop.f32.mrb[0].mxu0
        %v603 = vadd.f32 %v351, %v602
        %v604 = vpop.f32.mrb[0].mxu0
        %605 = vdwg.mxu0
        %606 = vmatprep.subr.bf16.mxu0 0
        %607 = vmatpush1.bf16.msra.mxu0 %v503
        %608 = vmatprep.subr.bf16.mxu0 0
        %609 = vmatpush1.bf16.msra.mxu0 %v504
        %610 = vmatprep.subr.bf16.mxu0 0
        %611 = vmatpush1.bf16.msra.mxu0 %v539
        %612 = vmatprep.subr.bf16.mxu0 0
        %613 = vmatpush1.bf16.msra.mxu0 0
        %614 = vmatprep.subr.bf16.mxu0 0
        %615 = vmatpush1.bf16.msra.mxu0 0
        %616 = vmatprep.subr.bf16.mxu0 0
        %617 = vmatpush1.bf16.msra.mxu0 0
        %618 = vmatprep.subr.bf16.mxu0 0
        %619 = vmatpush1.bf16.msra.mxu0 0
        %620 = vmatprep.subr.bf16.mxu0 0
        %621 = vmatpush1.bf16.msra.mxu0 0
        %622 = vmatprep.subr.bf16.mxu0 0
        %623 = vmatpush1.bf16.msra.mxu0 0
        %624 = vmatprep.subr.bf16.mxu0 0
        %625 = vmatpush1.bf16.msra.mxu0 0
        %626 = vmatprep.subr.bf16.mxu0 0
        %627 = vmatpush1.bf16.msra.mxu0 0
        %628 = vmatprep.subr.bf16.mxu0 0
        %629 = vmatpush1.bf16.msra.mxu0 0
        %630 = vmatprep.subr.bf16.mxu0 0
        %631 = vmatpush1.bf16.msra.mxu0 0
        %632 = vmatprep.subr.bf16.mxu0 0
        %633 = vmatpush1.bf16.msra.mxu0 0
        %634 = vmatprep.subr.bf16.mxu0 0
        %635 = vmatpush1.bf16.msra.mxu0 0
        %636 = vmatprep.subr.bf16.mxu0 0
        %637 = vmatpush1.bf16.msra.mxu0 0
        %638 = vmatprep.mubr.bf16.mxu0 0
        %639 = vmatmul.mubr.bf16.gmra.mrb[0].mxu0 %v526
        %v640 = vpop.f32.mrb[0].mxu0
        %v641 = vadd.f32 %v576, %v640
        %v642 = vpop.f32.mrb[0].mxu0
        %v643 = vpop.f32.mrb[0].mxu0
        %v644 = vadd.f32 %v579, %v643
        %v645 = vpop.f32.mrb[0].mxu0
        %646 = vmatprep.mubr.bf16.mxu0 0
        %647 = vmatmul.mubr.bf16.gmra.mrb[0].mxu0 %v529
        %v648 = vpop.f32.mrb[0].mxu0
        %v649 = vadd.f32 %v584, %v648
        %v650 = vpop.f32.mrb[0].mxu0
        %v651 = vpop.f32.mrb[0].mxu0
        %v652 = vadd.f32 %v587, %v651
        %v653 = vpop.f32.mrb[0].mxu0
        %654 = vmatprep.mubr.bf16.mxu0 0
        %655 = vmatmul.mubr.bf16.gmra.mrb[0].mxu0 %v532
        %v656 = vpop.f32.mrb[0].mxu0
        %v657 = vadd.f32 %v592, %v656
        %v658 = vpop.f32.mrb[0].mxu0
        %v659 = vpop.f32.mrb[0].mxu0
        %v660 = vadd.f32 %v595, %v659
        %v661 = vpop.f32.mrb[0].mxu0
        %662 = vmatprep.mubr.bf16.mxu0 0
        %663 = vmatmul.mubr.bf16.gmra.mrb[0].mxu0 %v535
        %v664 = vpop.f32.mrb[0].mxu0
        %v665 = vadd.f32 %v600, %v664
        %v666 = vpop.f32.mrb[0].mxu0
        %v667 = vpop.f32.mrb[0].mxu0
        %v668 = vadd.f32 %v603, %v667
        %v669 = vpop.f32.mrb[0].mxu0
        %670 = vdwg.mxu0
        %v671 = vmax.f32 %v641, 0.0
        %v672 = vmax.f32 %v644, 0.0
        %v673 = vmax.f32 %v649, 0.0
        %v674 = vmax.f32 %v652, 0.0
        %v675 = vmax.f32 %v657, 0.0
        %v676 = vmax.f32 %v660, 0.0
        %v677 = vmax.f32 %v665, 0.0
        %v678 = vmax.f32 %v668, 0.0
        %v679 = vld [vmem:[%s284] sm:$0xff]
        %v680 = vld [vmem:[%s284 + $0x8] sm:$0xf]
        %v683 = vunpack.c.l.b16 %v679
        %v684 = vunpack.c.h.b16 %v679
        %v685 = vunpack.c.l.b16 %v680
        %v686 = vpack.c.b16 %v683, %v683
        %v687 = vpack.c.b16 %v684, %v684
        %v688 = vpack.c.b16 %v685, %v685
        %v692 = vsel %vm524, %v688, 0
        %694 = vmatprep.subr.bf16.mxu0 0
        %695 = vmatpush1.bf16.msra.mxu0 %v487
        %696 = vmatprep.subr.bf16.mxu0 0
        %697 = vmatpush1.bf16.msra.mxu0 %v488
        %698 = vmatprep.subr.bf16.mxu0 0
        %699 = vmatpush1.bf16.msra.mxu0 %v489
        %700 = vmatprep.subr.bf16.mxu0 0
        %701 = vmatpush1.bf16.msra.mxu0 %v490
        %702 = vmatprep.subr.bf16.mxu0 0
        %703 = vmatpush1.bf16.msra.mxu0 %v491
        %704 = vmatprep.subr.bf16.mxu0 0
        %705 = vmatpush1.bf16.msra.mxu0 %v492
        %706 = vmatprep.subr.bf16.mxu0 0
        %707 = vmatpush1.bf16.msra.mxu0 %v493
        %708 = vmatprep.subr.bf16.mxu0 0
        %709 = vmatpush1.bf16.msra.mxu0 %v494
        %710 = vmatprep.subr.bf16.mxu0 0
        %711 = vmatpush1.bf16.msra.mxu0 %v495
        %712 = vmatprep.subr.bf16.mxu0 0
        %713 = vmatpush1.bf16.msra.mxu0 %v496
        %714 = vmatprep.subr.bf16.mxu0 0
        %715 = vmatpush1.bf16.msra.mxu0 %v497
        %716 = vmatprep.subr.bf16.mxu0 0
        %717 = vmatpush1.bf16.msra.mxu0 %v498
        %718 = vmatprep.subr.bf16.mxu0 0
        %719 = vmatpush1.bf16.msra.mxu0 %v499
        %720 = vmatprep.subr.bf16.mxu0 0
        %721 = vmatpush1.bf16.msra.mxu0 %v500
        %722 = vmatprep.subr.bf16.mxu0 0
        %723 = vmatpush1.bf16.msra.mxu0 %v501
        %724 = vmatprep.subr.bf16.mxu0 0
        %725 = vmatpush1.bf16.msra.mxu0 %v502
        %726 = vmatprep.mubr.bf16.mxu0 %v687
        %727 = vmatmul.mubr.bf16.gmra.mrb[0].mxu0 %v686
        %v728 = vpop.f32.mrb[0].mxu0
        %v729 = vadd.f32 %v351, %v728
        %v730 = vpop.f32.mrb[0].mxu0
        %v731 = vpop.f32.mrb[0].mxu0
        %v732 = vpop.f32.mrb[0].mxu0
        %733 = vdwg.mxu0
        %734 = vmatprep.subr.bf16.mxu0 0
        %735 = vmatpush1.bf16.msra.mxu0 %v503
        %736 = vmatprep.subr.bf16.mxu0 0
        %737 = vmatpush1.bf16.msra.mxu0 %v504
        %738 = vmatprep.subr.bf16.mxu0 0
        %739 = vmatpush1.bf16.msra.mxu0 %v539
        %740 = vmatprep.subr.bf16.mxu0 0
        %741 = vmatpush1.bf16.msra.mxu0 0
        %742 = vmatprep.subr.bf16.mxu0 0
        %743 = vmatpush1.bf16.msra.mxu0 0
        %744 = vmatprep.subr.bf16.mxu0 0
        %745 = vmatpush1.bf16.msra.mxu0 0
        %746 = vmatprep.subr.bf16.mxu0 0
        %747 = vmatpush1.bf16.msra.mxu0 0
        %748 = vmatprep.subr.bf16.mxu0 0
        %749 = vmatpush1.bf16.msra.mxu0 0
        %750 = vmatprep.subr.bf16.mxu0 0
        %751 = vmatpush1.bf16.msra.mxu0 0
        %752 = vmatprep.subr.bf16.mxu0 0
        %753 = vmatpush1.bf16.msra.mxu0 0
        %754 = vmatprep.subr.bf16.mxu0 0
        %755 = vmatpush1.bf16.msra.mxu0 0
        %756 = vmatprep.subr.bf16.mxu0 0
        %757 = vmatpush1.bf16.msra.mxu0 0
        %758 = vmatprep.subr.bf16.mxu0 0
        %759 = vmatpush1.bf16.msra.mxu0 0
        %760 = vmatprep.subr.bf16.mxu0 0
        %761 = vmatpush1.bf16.msra.mxu0 0
        %762 = vmatprep.subr.bf16.mxu0 0
        %763 = vmatpush1.bf16.msra.mxu0 0
        %764 = vmatprep.subr.bf16.mxu0 0
        %765 = vmatpush1.bf16.msra.mxu0 0
        %766 = vmatprep.mubr.bf16.mxu0 0
        %767 = vmatmul.mubr.bf16.gmra.mrb[0].mxu0 %v692
        %v768 = vpop.f32.mrb[0].mxu0
        %v769 = vadd.f32 %v729, %v768
        %v770 = vpop.f32.mrb[0].mxu0
        %v771 = vpop.f32.mrb[0].mxu0
        %v772 = vpop.f32.mrb[0].mxu0
        %773 = vdwg.mxu0
        %v774 = vmax.f32 %v769, 0.0
        %v775 = vmax.f32 %v671, %v672
        %v776 = vmax.f32 %v673, %v674
        %v777 = vmax.f32 %v675, %v676
        %v778 = vmax.f32 %v677, %v678
        %v779 = vmax.f32 %v775, %v774
        %v780 = vmax.f32 %v776, %v672
        %v781 = vmax.f32 %v777, %v674
        %v782 = vmax.f32 %v778, %v676
        %v787 = vrot.slane %v779, 7
        %v788 = vrot.slane %v780, 7
        %v789 = vrot.slane %v781, 7
        %v790 = vrot.slane %v782, 7
        %791 = vrot.lane.b32.xlu0 %v787, 64
        %v792 = vpop.permute.xlu0 %791
        %793 = vrot.lane.b32.xlu0 %v788, 64
        %v794 = vpop.permute.xlu0 %793
        %795 = vrot.lane.b32.xlu0 %v789, 64
        %v796 = vpop.permute.xlu0 %795
        %797 = vrot.lane.b32.xlu0 %v790, 64
        %v798 = vpop.permute.xlu0 %797
        %vm803 = vcmask 1040384
        %v804 = vsel %vm803, %v779, %v792
        %v805 = vsel %vm803, %v780, %v794
        %v806 = vsel %vm803, %v781, %v796
        %v807 = vsel %vm803, %v782, %v798
        %808 = vrot.lane.b32.xlu0 %v779, 64
        %v809 = vpop.permute.xlu0 %808
        %810 = vrot.lane.b32.xlu0 %v780, 64
        %v811 = vpop.permute.xlu0 %810
        %812 = vrot.lane.b32.xlu0 %v781, 64
        %v813 = vpop.permute.xlu0 %812
        %814 = vrot.lane.b32.xlu0 %v782, 64
        %v815 = vpop.permute.xlu0 %814
        %v820 = vmax.f32 %v779, %v809
        %v821 = vmax.f32 %v780, %v811
        %v822 = vmax.f32 %v781, %v813
        %v823 = vmax.f32 %v782, %v815
        %v824 = vmax.f32 %v820, %v804
        %v825 = vmax.f32 %v821, %v805
        %v826 = vmax.f32 %v822, %v806
        %v827 = vmax.f32 %v823, %v807
        %vm828 = vcmask 523264
        %829 = vst.msk [vmem:[%s262] sm:$0xff] %vm828, %v824
        %830 = vst.msk [vmem:[%s262 + $0x8] sm:$0xff] %vm828, %v825
        %831 = vst.msk [vmem:[%s262 + $0x10] sm:$0xff] %vm828, %v826
        %832 = vst.msk [vmem:[%s262 + $0x18] sm:$0xff] %vm828, %v827
        %s833 = sand.u32 %s150, 1
        %s834 = scalar_lea.sflag [#allocation3], %s833
        %s835 = sand.u32 %s150, 1
        %s836 = smul.addr %s835, 32
        %s837 = scalar_lea.vmem [#allocation2], %s836
        // Predicated region
        $region37: #{visible_module_forward.1} parent=35 // pred_check
          %p838 = pneg %p160
        $region38: #{visible_module_forward.1} parent=35 // pred_check_branch
          %840 = sbr.rel (%p838) target = $region40
        $region39: #{visible_module_forward.1} parent=35 // pred_region
          %s841 = smul.u32 4, %s23
          %s843 = ssub.s32 512, 512
          %844 = vsyncadd %s834, %s843
          %s845 = smul.addr %s22, 8
          %s846 = sadd.s32 %s841, %s845
          %s847 = smul.addr %s846, 128
          %s848 = scalar_lea.hbm %s4, %s847
          %s849 = sshll.u32 %s837, 4
          %s850 = int_to_ptr.vmem [resolvable:$true] %s849
          %855 = dma.vmem_to_hbm [thread:$0]  %s850, 512, %s848, %s834, 128, 128, 8
        $region40: #{visible_module_forward.1} parent=35 // pred_fallthru
          _
      $region36: #{visible_module_forward.1} parent=5 // pred_fallthru
        _
      %p856 = scmp.le.s32.totalorder 2, %s13
      // Predicated region
      $region41: #{visible_module_forward.1} parent=5 // pred_check
        %p857 = pneg %p856
      $region42: #{visible_module_forward.1} parent=5 // pred_check_branch
        %859 = sbr.rel (%p857) target = $region44
      $region43: #{visible_module_forward.1} parent=5 // pred_region
        %s860 = ssub.s32 %s13, 2
        // Predicated region
        $region45: #{visible_module_forward.1} parent=43 // pred_check
          %p861 = pneg %p166
        $region46: #{visible_module_forward.1} parent=43 // pred_check_branch
          %863 = sbr.rel (%p861) target = $region48
        $region47: #{visible_module_forward.1} parent=43 // pred_region
          %s864 = sand.u32 %s151, 1
          %s865 = scalar_lea.sflag [#allocation3], %s864
          %s866 = sand.u32 %s151, 1
          %s867 = smul.addr %s866, 32
          %s868 = scalar_lea.vmem [#allocation2], %s867
          %869 = dma.done %s865, 512
        $region48: #{visible_module_forward.1} parent=43 // pred_fallthru
          _
      $region44: #{visible_module_forward.1} parent=5 // pred_fallthru
        _
    $region6: #{visible_module_forward.1} parent=1 // loop_footer
      %s17 = sadd.s32 1, %s13
    $region7: #{visible_module_forward.1} parent=1 // loop_footer_branch
      %12 = sbr.rel target = $region3
    $region8: #{visible_module_forward.1} parent=1 // loop_exit
      _
    %870 = vsyncpa [#allocation3], 1
    %s871 = scalar_lea.sflag [#allocation3], 1
    %872 = vsyncpa %s871, 1

</llo_original>
